<compile_context>
chip_gen: v7x
topology: tpu7x:2x2x1
jax: 0.10.0
libtpu: 0.0.40
codegen_flags: <defaults>
</compile_context>

<pallas_src>
import math

import jax
import jax.numpy as jnp
from jax.experimental import pallas as pl
from jax.experimental.pallas import tpu as pltpu


def gaussian_1d_factors(kernel_size, sigma, dim=2, dtype=jnp.float32):
    """Normalized per-dimension 1D Gaussian factors.

    The torch module builds kernel2d[i, j] = g0(i) * g1(j) / sum(g0 * g1),
    which equals outer(g0 / sum(g0), g1 / sum(g1)) -> exactly separable.
    """
    if isinstance(kernel_size, (int, float)):
        kernel_size = [int(kernel_size)] * dim
    if isinstance(sigma, (int, float)):
        sigma = [float(sigma)] * dim
    factors = []
    for size, std in zip(kernel_size, sigma):
        mean = (size - 1) / 2.0
        coords = jnp.arange(size, dtype=jnp.float32)
        g = (1.0 / (std * math.sqrt(2.0 * math.pi))) * jnp.exp(
            -(((coords - mean) / std) ** 2) / 2.0)
        factors.append((g / jnp.sum(g)).astype(dtype))
    return factors


def make_gaussian_weight_2d(channels, kernel_size, sigma, dim=2, dtype=jnp.float32):
    """Replicates GaussianSmoothing.__init__ weight construction (dim=2)."""
    if isinstance(kernel_size, (int, float)):
        kernel_size = [int(kernel_size)] * dim
    if isinstance(sigma, (int, float)):
        sigma = [float(sigma)] * dim
    kernel = jnp.ones((), dtype=jnp.float32)
    grids = jnp.meshgrid(
        *[jnp.arange(size, dtype=jnp.float32) for size in kernel_size],
        indexing="ij")
    for size, std, mgrid in zip(kernel_size, sigma, grids):
        mean = (size - 1) / 2.0
        kernel = kernel * (
            1.0 / (std * math.sqrt(2.0 * math.pi))
            * jnp.exp(-(((mgrid - mean) / std) ** 2) / 2.0))
    kernel = kernel / jnp.sum(kernel)
    kernel = jnp.broadcast_to(kernel[None, :, :], (channels, *kernel.shape))
    return kernel.astype(dtype)


def _choose_channel_group(N, C, H, W, Hout, Wout, itemsize=4,
                          vmem_budget_bytes=24 << 20):
    """Largest channel-group size whose (double-buffered) blocks fit the budget."""
    divisors = [d for d in range(1, C + 1) if C % d == 0]

    def blk_bytes(cg):
        in_blk = cg * H * W * itemsize
        out_blk = cg * Hout * Wout * itemsize
        acc_blk = cg * Hout * W * 4            # f32 accumulator live range
        return 2 * (in_blk + out_blk) + acc_blk

    fitting = [d for d in divisors if blk_bytes(d) <= vmem_budget_bytes]
    cg = max(fitting) if fitting else 1
    # Ensure >= 2 grid steps when the channel axis allows it: v7x has two
    # TensorCores and the software pipeline needs something to overlap.
    if N * (C // cg) < 2:
        smaller = [d for d in divisors if d < cg]
        if smaller:
            cg = max(smaller)
    return cg, blk_bytes(cg)


# TODO(synk): only the default dim=2 forward (F.conv2d) is implemented; the
# dim=1 / dim=3 paths of the module are not.
def gaussian_smoothing_2d(x, kernel_size, sigma):
    """Depthwise valid conv2d with a Gaussian kernel (groups == channels).

    x: (N, C, H, W) float32 -> (N, C, H-KH+1, W-KW+1) float32
    """
    N, C, H, W = x.shape
    wv, wh = gaussian_1d_factors(kernel_size, sigma, dim=2)
    KH, KW = int(wv.shape[0]), int(wh.shape[0])
    if H < KH or W < KW:
        raise ValueError(
            f"Spatial dims ({H}, {W}) must be >= kernel size ({KH}, {KW}) "
            "for a valid convolution.")
    Hout, Wout = H - KH + 1, W - KW + 1

    itemsize = jnp.dtype(x.dtype).itemsize
    Cg, blk_bytes = _choose_channel_group(N, C, H, W, Hout, Wout, itemsize)
    G = C // Cg

    def kernel(wv_ref, wh_ref, x_ref, o_ref):
        xt = x_ref[0].astype(jnp.float32)            # (Cg, H, W) in VMEM
        # Vertical (sublane-axis) pass: KH-tap shift-MAC with scalar taps from
        # SMEM, shared by all channels.  Taps never cross a channel boundary
        # because every channel keeps its own H rows -> no halo / no pad.
        acc = wv_ref[0] * xt[:, 0:Hout, :]
        for di in range(1, KH):                      # unrolled, KH-1 taps
            acc = acc + wv_ref[di] * xt[:, di:di + Hout, :]
        # Horizontal (lane-axis) pass: KW-tap shift-MAC.  Static lane shifts
        # go to the otherwise-idle XLU slot; the output is written compact
        # (Wout wide) so no padded lanes are ever shipped to HBM.
        out = wh_ref[0] * acc[:, :, 0:Wout]
        for dj in range(1, KW):
            out = out + wh_ref[dj] * acc[:, :, dj:dj + Wout]
        o_ref[0] = out.astype(o_ref.dtype)

    # Real separable-filter work / traffic (lets XLA schedule around the call).
    cost = pl.CostEstimate(
        flops=2 * N * C * Hout * (W * KH + Wout * KW),
        transcendentals=0,
        bytes_accessed=(N * C * H * W + N * C * Hout * Wout) * itemsize
        + (KH + KW) * 4,
    )

    # Generation-safe VMEM limit derived from the actual block footprint
    # (always < 64 MiB so it also fits v7x's per-core VMEM).
    vmem_limit = int(min(60 << 20, max(8 << 20, 2 * blk_bytes)))

    out = pl.pallas_call(
        kernel,
        out_shape=jax.ShapeDtypeStruct((N, C, Hout, Wout), x.dtype),
        grid=(N, G),
        in_specs=[
            pl.BlockSpec(memory_space=pltpu.SMEM),                 # wv: (KH,)
            pl.BlockSpec(memory_space=pltpu.SMEM),                 # wh: (KW,)
            pl.BlockSpec((1, Cg, H, W), lambda n, g: (n, g, 0, 0)),
        ],
        out_specs=pl.BlockSpec((1, Cg, Hout, Wout), lambda n, g: (n, g, 0, 0)),
        compiler_params=pltpu.CompilerParams(
            dimension_semantics=("parallel", "parallel"),
            vmem_limit_bytes=vmem_limit,
        ),
        cost_estimate=cost,
    )(wv, wh, x)
    return out


def _reference(x, weight2d):
    """Plain-JAX reference of the depthwise valid conv (matches F.conv2d)."""
    N, C, H, W = x.shape
    _, KH, KW = weight2d.shape
    Hout, Wout = H - KH + 1, W - KW + 1
    out = jnp.zeros((N, C, Hout, Wout), jnp.float32)
    for di in range(KH):
        for dj in range(KW):
            out = out + weight2d[None, :, di, dj, None, None] * x[
                :, :, di:di + Hout, dj:dj + Wout
            ]
    return out


if __name__ == "__main__":
    # Module config: channels=4, kernel_size=3, sigma=1.0, dim=2.
    channels, kernel_size, sigma = 4, 3, 1.0
    N, H, W = 2, 16, 16

    key = jax.random.PRNGKey(0)
    x = jax.random.normal(key, (N, channels, H, W), dtype=jnp.float32)

    out = gaussian_smoothing_2d(x, kernel_size, sigma)
    out = jax.block_until_ready(out)

    weight2d = make_gaussian_weight_2d(channels, kernel_size, sigma)
    ref = _reference(x, weight2d)

    assert out.shape == (N, channels, H - kernel_size + 1, W - kernel_size + 1)
    assert jnp.allclose(out, ref, atol=1e-5, rtol=1e-5)

    print("KERNEL_OK")
</pallas_src>

<mosaic_0001>
module attributes {stable_mosaic.version = 11 : i64} {
  func.func @kernel(%arg0: i32, %arg1: i32, %arg2: memref<3xf32, #tpu.memory_space<smem>>, %arg3: memref<3xf32, #tpu.memory_space<smem>>, %arg4: memref<1x4x16x16xf32, #tpu.memory_space<vmem>>, %arg5: memref<1x4x14x14xf32, #tpu.memory_space<vmem>>) attributes {dimension_semantics = [#tpu.dimension_semantics<parallel>, #tpu.dimension_semantics<parallel>], iteration_bounds = array<i64: 2, 1>, scalar_prefetch = 0 : i64, scratch_operands = 0 : i64, tpu.core_type = #tpu.core_type<tc>, window_params = [{transform_indices = @transform_0, window_bounds = array<i64: 3>}, {transform_indices = @transform_1, window_bounds = array<i64: 3>}, {transform_indices = @transform_2, window_bounds = array<i64: 1, 4, 16, 16>}, {transform_indices = @transform_3, window_bounds = array<i64: 1, 4, 14, 14>}]} {
    %c0 = arith.constant 0 : index
    %c0_0 = arith.constant 0 : index
    %c0_1 = arith.constant 0 : index
    %c0_2 = arith.constant 0 : index
    %0 = vector.load %arg4[%c0, %c0_0, %c0_1, %c0_2] : memref<1x4x16x16xf32, #tpu.memory_space<vmem>>, vector<1x4x16x16xf32>
    %1 = vector.shape_cast %0 : vector<1x4x16x16xf32> to vector<4x16x16xf32>
    %c0_3 = arith.constant 0 : index
    %2 = memref.load %arg2[%c0_3] : memref<3xf32, #tpu.memory_space<smem>>
    %3 = vector.extract_strided_slice %1 {offsets = [0, 0, 0], sizes = [4, 14, 16], strides = [1, 1, 1]} : vector<4x16x16xf32> to vector<4x14x16xf32>
    %4 = vector.broadcast %2 : f32 to vector<4x14x16xf32>
    %5 = arith.mulf %4, %3 : vector<4x14x16xf32>
    %c1 = arith.constant 1 : index
    %6 = memref.load %arg2[%c1] : memref<3xf32, #tpu.memory_space<smem>>
    %7 = vector.extract_strided_slice %1 {offsets = [0, 1, 0], sizes = [4, 14, 16], strides = [1, 1, 1]} : vector<4x16x16xf32> to vector<4x14x16xf32>
    %8 = vector.broadcast %6 : f32 to vector<4x14x16xf32>
    %9 = arith.mulf %8, %7 : vector<4x14x16xf32>
    %10 = arith.addf %5, %9 : vector<4x14x16xf32>
    %c2 = arith.constant 2 : index
    %11 = memref.load %arg2[%c2] : memref<3xf32, #tpu.memory_space<smem>>
    %12 = vector.extract_strided_slice %1 {offsets = [0, 2, 0], sizes = [4, 14, 16], strides = [1, 1, 1]} : vector<4x16x16xf32> to vector<4x14x16xf32>
    %13 = vector.broadcast %11 : f32 to vector<4x14x16xf32>
    %14 = arith.mulf %13, %12 : vector<4x14x16xf32>
    %15 = arith.addf %10, %14 : vector<4x14x16xf32>
    %c0_4 = arith.constant 0 : index
    %16 = memref.load %arg3[%c0_4] : memref<3xf32, #tpu.memory_space<smem>>
    %17 = vector.extract_strided_slice %15 {offsets = [0, 0, 0], sizes = [4, 14, 14], strides = [1, 1, 1]} : vector<4x14x16xf32> to vector<4x14x14xf32>
    %18 = vector.broadcast %16 : f32 to vector<4x14x14xf32>
    %19 = arith.mulf %18, %17 : vector<4x14x14xf32>
    %c1_5 = arith.constant 1 : index
    %20 = memref.load %arg3[%c1_5] : memref<3xf32, #tpu.memory_space<smem>>
    %21 = vector.extract_strided_slice %15 {offsets = [0, 0, 1], sizes = [4, 14, 14], strides = [1, 1, 1]} : vector<4x14x16xf32> to vector<4x14x14xf32>
    %22 = vector.broadcast %20 : f32 to vector<4x14x14xf32>
    %23 = arith.mulf %22, %21 : vector<4x14x14xf32>
    %24 = arith.addf %19, %23 : vector<4x14x14xf32>
    %c2_6 = arith.constant 2 : index
    %25 = memref.load %arg3[%c2_6] : memref<3xf32, #tpu.memory_space<smem>>
    %26 = vector.extract_strided_slice %15 {offsets = [0, 0, 2], sizes = [4, 14, 14], strides = [1, 1, 1]} : vector<4x14x16xf32> to vector<4x14x14xf32>
    %27 = vector.broadcast %25 : f32 to vector<4x14x14xf32>
    %28 = arith.mulf %27, %26 : vector<4x14x14xf32>
    %29 = arith.addf %24, %28 : vector<4x14x14xf32>
    %c0_7 = arith.constant 0 : index
    %c0_8 = arith.constant 0 : index
    %c0_9 = arith.constant 0 : index
    %c0_10 = arith.constant 0 : index
    %30 = vector.load %arg5[%c0_7, %c0_8, %c0_9, %c0_10] : memref<1x4x14x14xf32, #tpu.memory_space<vmem>>, vector<1x4x14x14xf32>
    %31 = vector.shape_cast %30 : vector<1x4x14x14xf32> to vector<4x14x14xf32>
    %32 = vector.shape_cast %29 : vector<4x14x14xf32> to vector<1x4x14x14xf32>
    tpu.vector_store %arg5[%c0_7, %c0_8, %c0_9, %c0_10], %32 {strides = array<i32>} : memref<1x4x14x14xf32, #tpu.memory_space<vmem>>, vector<1x4x14x14xf32>,
    return
  }
  func.func @transform_0(%arg0: i32, %arg1: i32) -> i32 {
    %c0_i32 = arith.constant 0 : i32
    %c0_i32_0 = arith.constant 0 : i32
    return %c0_i32 : i32
  }
  func.func @transform_1(%arg0: i32, %arg1: i32) -> i32 {
    %c0_i32 = arith.constant 0 : i32
    %c0_i32_0 = arith.constant 0 : i32
    return %c0_i32 : i32
  }
  func.func @transform_2(%arg0: i32, %arg1: i32) -> (i32, i32, i32, i32) {
    %c0_i32 = arith.constant 0 : i32
    %c0_i32_0 = arith.constant 0 : i32
    %c0_i32_1 = arith.constant 0 : i32
    return %arg0, %arg1, %c0_i32, %c0_i32_0 : i32, i32, i32, i32
  }
  func.func @transform_3(%arg0: i32, %arg1: i32) -> (i32, i32, i32, i32) {
    %c0_i32 = arith.constant 0 : i32
    %c0_i32_0 = arith.constant 0 : i32
    %c0_i32_1 = arith.constant 0 : i32
    return %arg0, %arg1, %c0_i32, %c0_i32_0 : i32, i32, i32, i32
  }
}

</mosaic_0001>

<llo_original>
// kernel: tpu_custom_call.1
$region0: #{tpu_custom_call.1}
  #allocation0 [shape = 'u32[]', space=smem, size = 0x4, offset = 0x4, fixed_abs, tag = 'smem constant byte address 0x4 - core index']
  #allocation1 [shape = 'u32[144,128]{1,0:T(1,128)}', space=vmem, size = 0x12000, scoped, tag = 'internal scratch']
  %s0 = inlined_call_operand.hbm [shape: f32[3], index: 0, kind: input, shape index: {}]
  %s1 = inlined_call_operand.vmem [shape: f32[3], index: 1, kind: input, shape index: {}]
  %s2 = inlined_call_operand.hbm [shape: f32[2,4,16,16], index: 2, kind: input, shape index: {}]
  %s3 = inlined_call_operand.vmem [shape: f32[2,4,14,14], index: 3, kind: output, shape index: {}]
  %s4 = sld [smem:[#allocation0]]
  $region57: #{tpu_custom_call.1} parent=0
    _
  %s6 = ssub.s32 1, %s4
  %s7 = scalar_select 0, %s6, %s4
  $region1: #{tpu_custom_call.1} parent=0
    #allocation2 [shape = 'u8[512]{0}', space=smem, size = 0x200, scoped, tag = 'input window, operand 0, single buffered']
    #allocation3 [shape = 's32[2]{0}', space=sflag, size = 0x8, scoped, tag = 'scoped memory for tpu_custom_call.1']
    #allocation4 [shape = 's32[2]{0}', space=sflag, size = 0x8, scoped, tag = 'scoped memory for tpu_custom_call.1']
    #allocation5 [shape = 's32[2]{0}', space=sflag, size = 0x8, scoped, tag = 'scoped memory for tpu_custom_call.1']
    #allocation6 [shape = 'u8[512]{0}', space=smem, size = 0x200, scoped, tag = 'input window, operand 1, single buffered']
    #allocation7 [shape = 'u8[65536]{0}', space=vmem, size = 0x10000, scoped, tag = 'input window, operand 2']
    %8 = vsyncpa [#allocation4], 0
    %9 = vsyncpa [#allocation5], 0
    %10 = vsyncpa [#allocation3], 0
    %s11 = scalar_lea.sflag [#allocation3], 1
    %12 = vsyncpa %s11, 0
    loop: start=0, step=1, limit=4
    $region2: #{tpu_custom_call.1} parent=1 // loop_pre_header
      _
    $region3: #{tpu_custom_call.1} parent=1 // loop_header
      %s14 = sphi 0, %s18
      %p15 = scmp.ge.s32.totalorder %s14, 4
      %s21 = sphi 0, %s33
      %s22 = sphi 0, %s29
      %s23 = sphi 0, %s21
      %s24 = sphi 0, %s22
      %s25 = sphi 0, %s23
      %s26 = sphi 0, %s24
      %s34 = sphi 0, %s34
      %s36 = sphi 0, %s34
      %s37 = sphi 0, %s36
      %s51 = sphi 0, %s37
      %s55 = sphi 0, %s55
      %s57 = sphi 0, %s55
      %s58 = sphi 0, %s57
      %s72 = sphi 0, %s58
      %s80 = sphi 0, %s82
      %s83 = sphi 0, %s80
      %s84 = sphi 0, %s83
      %s100 = sphi 0, %s84
      %s108 = sphi 0, %s110
      %s111 = sphi 0, %s108
      %s112 = sphi 0, %s111
      %s128 = sphi 0, %s112
    $region4: #{tpu_custom_call.1} parent=1 // loop_header_branch
      %17 = sbr.rel (%p15) target = $region8
    $region5: #{tpu_custom_call.1} parent=1 // loop_body
      %s19 = ssub.s32 %s14, 1
      %s20 = ssub.s32 %s14, 2
      %s27 = sadd.s32 1, %s22
      %p28 = scmp.ge.s32.totalorder %s27, 1
      %s29 = scalar_select %p28, 0, %s27
      %s30 = sadd.s32 1, %s21
      %s31 = scalar_select %p28, %s30, %s21
      %p32 = scmp.ge.s32.totalorder %s31, 2
      %s33 = scalar_select %p32, 0, %s31
      %s35 = sadd.s32 %s34, 1
      %p38 = scmp.eq.s32.totalorder %s14, 1
      %p39 = scmp.ne.s32.totalorder %s34, %s36
      %p40 = scmp.eq.s32.totalorder %s14, 0
      %p41 = por %p39, %p40
      %p42 = scmp.ne.s32.totalorder %s34, %s36
      %p43 = scmp.eq.s32.totalorder %s19, 1
      %p44 = por %p42, %p43
      %p45 = scmp.ne.s32.totalorder %s36, %s37
      %p46 = scmp.eq.s32.totalorder %s19, 0
      %p47 = por %p45, %p46
      %p48 = scmp.ne.s32.totalorder %s36, %s37
      %p49 = scmp.eq.s32.totalorder %s20, 1
      %p50 = por %p48, %p49
      %p52 = scmp.ne.s32.totalorder %s37, %s51
      %p53 = scmp.eq.s32.totalorder %s20, 0
      %p54 = por %p52, %p53
      %s56 = sadd.s32 %s55, 1
      %p59 = scmp.eq.s32.totalorder %s14, 1
      %p60 = scmp.ne.s32.totalorder %s55, %s57
      %p61 = scmp.eq.s32.totalorder %s14, 0
      %p62 = por %p60, %p61
      %p63 = scmp.ne.s32.totalorder %s55, %s57
      %p64 = scmp.eq.s32.totalorder %s19, 1
      %p65 = por %p63, %p64
      %p66 = scmp.ne.s32.totalorder %s57, %s58
      %p67 = scmp.eq.s32.totalorder %s19, 0
      %p68 = por %p66, %p67
      %p69 = scmp.ne.s32.totalorder %s57, %s58
      %p70 = scmp.eq.s32.totalorder %s20, 1
      %p71 = por %p69, %p70
      %p73 = scmp.ne.s32.totalorder %s58, %s72
      %p74 = scmp.eq.s32.totalorder %s20, 0
      %p75 = por %p73, %p74
      %s76 = ssub.s32 %s21, %s33
      %s77 = ssub.s32 %s22, %s29
      %s78 = sor.u32 %s76, %s77
      %p79 = scmp.eq.s32.totalorder %s78, 0
      %s81 = sadd.s32 %s80, 1
      %s82 = scalar_select %p79, %s80, %s81
      %p85 = pneg %p79
      %p86 = scmp.eq.s32.totalorder %s14, 1
      %p87 = por %p85, %p86
      %p88 = scmp.ne.s32.totalorder %s80, %s83
      %p89 = scmp.eq.s32.totalorder %s14, 0
      %p90 = por %p88, %p89
      %p91 = scmp.ne.s32.totalorder %s80, %s83
      %p92 = scmp.eq.s32.totalorder %s19, 1
      %p93 = por %p91, %p92
      %p94 = scmp.ne.s32.totalorder %s83, %s84
      %p95 = scmp.eq.s32.totalorder %s19, 0
      %p96 = por %p94, %p95
      %p97 = scmp.ne.s32.totalorder %s83, %s84
      %p98 = scmp.eq.s32.totalorder %s20, 1
      %p99 = por %p97, %p98
      %p101 = scmp.ne.s32.totalorder %s84, %s100
      %p102 = scmp.eq.s32.totalorder %s20, 0
      %p103 = por %p101, %p102
      %s104 = ssub.s32 %s21, %s33
      %s105 = ssub.s32 %s22, %s29
      %s106 = sor.u32 %s104, %s105
      %p107 = scmp.eq.s32.totalorder %s106, 0
      %s109 = sadd.s32 %s108, 1
      %s110 = scalar_select %p107, %s108, %s109
      %p113 = pneg %p107
      %p114 = scmp.eq.s32.totalorder %s14, 1
      %p115 = por %p113, %p114
      %p116 = scmp.ne.s32.totalorder %s108, %s111
      %p117 = scmp.eq.s32.totalorder %s14, 0
      %p118 = por %p116, %p117
      %p119 = scmp.ne.s32.totalorder %s108, %s111
      %p120 = scmp.eq.s32.totalorder %s19, 1
      %p121 = por %p119, %p120
      %p122 = scmp.ne.s32.totalorder %s111, %s112
      %p123 = scmp.eq.s32.totalorder %s19, 0
      %p124 = por %p122, %p123
      %p125 = scmp.ne.s32.totalorder %s111, %s112
      %p126 = scmp.eq.s32.totalorder %s20, 1
      %p127 = por %p125, %p126
      %p129 = scmp.ne.s32.totalorder %s112, %s128
      %p130 = scmp.eq.s32.totalorder %s20, 0
      %p131 = por %p129, %p130
      %p132 = scmp.le.s32.totalorder 1, %s14
      %p133 = scmp.lt.s32.totalorder %s14, 3
      %p134 = pnand %p132, %p133
      %p135 = pneg %p134
      // Predicated region
      $region9: #{tpu_custom_call.1} parent=5 // pred_check
        _
      $region10: #{tpu_custom_call.1} parent=5 // pred_check_branch
        %137 = sbr.rel (%p134) target = $region12
      $region11: #{tpu_custom_call.1} parent=5 // pred_region
        %s138 = ssub.s32 %s14, 1
        // Predicated region
        $region13: #{tpu_custom_call.1} parent=11 // pred_check
          %p139 = pneg %p47
        $region14: #{tpu_custom_call.1} parent=11 // pred_check_branch
          %141 = sbr.rel (%p139) target = $region16
        $region15: #{tpu_custom_call.1} parent=11 // pred_region
          %s143 = ssub.s32 16, 16
          %144 = vsyncadd [#allocation4], %s143
          %147 = dma.hbm_to_smem %s0, 16, [#allocation2], [#allocation4]
        $region16: #{tpu_custom_call.1} parent=11 // pred_fallthru
          _
        // Predicated region
        $region17: #{tpu_custom_call.1} parent=11 // pred_check
          %p148 = pneg %p68
        $region18: #{tpu_custom_call.1} parent=11 // pred_check_branch
          %150 = sbr.rel (%p148) target = $region20
        $region19: #{tpu_custom_call.1} parent=11 // pred_region
          %s152 = ssub.s32 16, 16
          %153 = vsyncadd [#allocation5], %s152
          %s155 = sshll.u32 %s1, 4
          %s156 = int_to_ptr.vmem [resolvable:$true] %s155
          %158 = dma.vmem_to_smem %s156, 16, [#allocation6], [#allocation5]
        $region20: #{tpu_custom_call.1} parent=11 // pred_fallthru
          _
      $region12: #{tpu_custom_call.1} parent=5 // pred_fallthru
        _
      %p159 = scmp.lt.s32.totalorder %s14, 2
      // Predicated region
      $region21: #{tpu_custom_call.1} parent=5 // pred_check
        %p160 = pneg %p159
      $region22: #{tpu_custom_call.1} parent=5 // pred_check_branch
        %162 = sbr.rel (%p160) target = $region24
      $region23: #{tpu_custom_call.1} parent=5 // pred_region
        // Predicated region
        $region25: #{tpu_custom_call.1} parent=23 // pred_check
          %p163 = pneg %p90
        $region26: #{tpu_custom_call.1} parent=23 // pred_check_branch
          %165 = sbr.rel (%p163) target = $region28
        $region27: #{tpu_custom_call.1} parent=23 // pred_region
          %s166 = sand.u32 %s80, 1
          %s167 = scalar_lea.sflag [#allocation3], %s166
          %s168 = sand.u32 %s80, 1
          %s169 = smul.addr %s168, 64
          %s170 = scalar_lea.vmem [#allocation7], %s169
          %s171 = smul.u32 4, %s22
          %s173 = ssub.s32 1024, 1024
          %174 = vsyncadd %s167, %s173
          %s175 = smul.addr %s171, 2
          %s176 = smul.addr %s21, 8
          %s177 = sadd.s32 %s175, %s176
          %s178 = smul.addr %s177, 128
          %s179 = scalar_lea.hbm %s2, %s178
          %s180 = sshll.u32 %s170, 4
          %s181 = int_to_ptr.vmem [resolvable:$true] %s180
          %186 = dma.hbm_to_vmem [thread:$0]  %s179, 1024, %s181, %s167, 128, 128, 8
        $region28: #{tpu_custom_call.1} parent=23 // pred_fallthru
          _
      $region24: #{tpu_custom_call.1} parent=5 // pred_fallthru
        _
      %p187 = scmp.le.s32.totalorder 1, %s14
      %p188 = scmp.lt.s32.totalorder %s14, 3
      %p189 = pnand %p187, %p188
      %p190 = pneg %p189
      // Predicated region
      $region29: #{tpu_custom_call.1} parent=5 // pred_check
        _
      $region30: #{tpu_custom_call.1} parent=5 // pred_check_branch
        %192 = sbr.rel (%p189) target = $region32
      $region31: #{tpu_custom_call.1} parent=5 // pred_region
        %s193 = ssub.s32 %s14, 1
        // Predicated region
        $region33: #{tpu_custom_call.1} parent=31 // pred_check
          %p194 = pneg %p47
        $region34: #{tpu_custom_call.1} parent=31 // pred_check_branch
          %196 = sbr.rel (%p194) target = $region36
        $region35: #{tpu_custom_call.1} parent=31 // pred_region
          %197 = dma.done [#allocation4], 16
        $region36: #{tpu_custom_call.1} parent=31 // pred_fallthru
          _
        // Predicated region
        $region37: #{tpu_custom_call.1} parent=31 // pred_check
          %p198 = pneg %p68
        $region38: #{tpu_custom_call.1} parent=31 // pred_check_branch
          %200 = sbr.rel (%p198) target = $region40
        $region39: #{tpu_custom_call.1} parent=31 // pred_region
          %201 = dma.done [#allocation5], 16
        $region40: #{tpu_custom_call.1} parent=31 // pred_fallthru
          _
        %s202 = sand.u32 %s83, 1
        %s203 = scalar_lea.sflag [#allocation3], %s202
        %s204 = sand.u32 %s83, 1
        %s205 = smul.addr %s204, 64
        %s206 = scalar_lea.vmem [#allocation7], %s205
        // Predicated region
        $region41: #{tpu_custom_call.1} parent=31 // pred_check
          %p207 = pneg %p96
        $region42: #{tpu_custom_call.1} parent=31 // pred_check_branch
          %209 = sbr.rel (%p207) target = $region44
        $region43: #{tpu_custom_call.1} parent=31 // pred_region
          %210 = dma.done %s203, 1024
        $region44: #{tpu_custom_call.1} parent=31 // pred_fallthru
          _
        %211 = sfence
        %p212 = pneg %p47
        %p213 = pneg %p44
        %p214 = pneg %p68
        %p215 = pneg %p65
        %s216 = sand.u32 %s83, 1
        %s217 = scalar_lea.sflag [#allocation3], %s216
        %s218 = sand.u32 %s83, 1
        %s219 = smul.addr %s218, 64
        %s220 = scalar_lea.vmem [#allocation7], %s219
        %p221 = pneg %p96
        %p222 = pneg %p93
        %p223 = pneg %p124
        %p224 = pneg %p121
        %s225 = smul.u32 4, %s24
        %p226 = scmp.lt.s32.totalorder %s23, 1
        %s227 = scalar_select %p226, %s23, 1
        %p228 = scmp.lt.s32.totalorder %s225, 3
        %s229 = scalar_select %p228, %s225, 3
        %s230 = smul.addr %s229, 2
        %s231 = smul.addr %s227, 8
        %s232 = sadd.s32 %s230, %s231
        %s233 = smul.addr %s232, 8
        %s234 = scalar_lea.vmem %s3, %s233
        %s235 = smul.u32 4, %s24
        %s236 = smul.u32 4, %s24
        %p237 = scmp.lt.s32.totalorder %s23, 1
        %s238 = scalar_select %p237, %s23, 1
        %p239 = scmp.lt.s32.totalorder %s236, 3
        %s240 = scalar_select %p239, %s236, 3
        %s241 = smul.addr %s240, 2
        %s242 = smul.addr %s238, 8
        %s243 = sadd.s32 %s241, %s242
        %s244 = smul.addr %s243, 8
        %s245 = scalar_lea.vmem %s3, %s244
        %s246 = smul.u32 4, %s24
        %v247 = vld [vmem:[%s206] sm:$0xff]
        %v248 = vld [vmem:[%s206 + $0x8] sm:$0xff]
        %v249 = vld [vmem:[%s206 + $0x10] sm:$0xff]
        %v250 = vld [vmem:[%s206 + $0x18] sm:$0xff]
        %v251 = vld [vmem:[%s206 + $0x20] sm:$0xff]
        %v252 = vld [vmem:[%s206 + $0x28] sm:$0xff]
        %v253 = vld [vmem:[%s206 + $0x30] sm:$0xff]
        %v254 = vld [vmem:[%s206 + $0x38] sm:$0xff]
        %s255 = sld [smem:[#allocation2]]
        %v256 = vstv %s255
        %v257 = vmul.f32 %v256, %v247
        %v258 = vmul.f32 %v256, %v248
        %v259 = vmul.f32 %v256, %v249
        %v260 = vmul.f32 %v256, %v250
        %v261 = vmul.f32 %v256, %v251
        %v262 = vmul.f32 %v256, %v252
        %v263 = vmul.f32 %v256, %v253
        %v264 = vmul.f32 %v256, %v254
        %s265 = sld [smem:[#allocation2 + $0x1]]
        %v266 = vstv %s265
        %v267 = vmul.f32 %v266, %v247
        %v268 = vmul.f32 %v266, %v248
        %v269 = vmul.f32 %v266, %v249
        %v270 = vmul.f32 %v266, %v250
        %v271 = vmul.f32 %v266, %v251
        %v272 = vmul.f32 %v266, %v252
        %v273 = vmul.f32 %v266, %v253
        %v274 = vmul.f32 %v266, %v254
        %vm283 = vcmask 1046528
        %v284 = vrot.slane %v267, 1
        %v285 = vrot.slane %v268, 1
        %v286 = vsel %vm283, %v284, %v285
        %v287 = vrot.slane %v269, 1
        %v288 = vrot.slane %v270, 1
        %v289 = vsel %vm283, %v287, %v288
        %v290 = vrot.slane %v271, 1
        %v291 = vrot.slane %v272, 1
        %v292 = vsel %vm283, %v290, %v291
        %v293 = vrot.slane %v273, 1
        %v294 = vrot.slane %v274, 1
        %v295 = vsel %vm283, %v293, %v294
        %v304 = vadd.f32 %v257, %v286
        %v305 = vadd.f32 %v258, %v285
        %v306 = vadd.f32 %v259, %v289
        %v307 = vadd.f32 %v260, %v288
        %v308 = vadd.f32 %v261, %v292
        %v309 = vadd.f32 %v262, %v291
        %v310 = vadd.f32 %v263, %v295
        %v311 = vadd.f32 %v264, %v294
        %s312 = sld [smem:[#allocation2 + $0x2]]
        %v313 = vstv %s312
        %v314 = vmul.f32 %v313, %v247
        %v315 = vmul.f32 %v313, %v248
        %v316 = vmul.f32 %v313, %v249
        %v317 = vmul.f32 %v313, %v250
        %v318 = vmul.f32 %v313, %v251
        %v319 = vmul.f32 %v313, %v252
        %v320 = vmul.f32 %v313, %v253
        %v321 = vmul.f32 %v313, %v254
        %vm330 = vcmask 1045504
        %v331 = vrot.slane %v314, 2
        %v332 = vrot.slane %v315, 2
        %v333 = vsel %vm330, %v331, %v332
        %v334 = vrot.slane %v316, 2
        %v335 = vrot.slane %v317, 2
        %v336 = vsel %vm330, %v334, %v335
        %v337 = vrot.slane %v318, 2
        %v338 = vrot.slane %v319, 2
        %v339 = vsel %vm330, %v337, %v338
        %v340 = vrot.slane %v320, 2
        %v341 = vrot.slane %v321, 2
        %v342 = vsel %vm330, %v340, %v341
        %v351 = vadd.f32 %v304, %v333
        %v352 = vadd.f32 %v305, %v332
        %v353 = vadd.f32 %v306, %v336
        %v354 = vadd.f32 %v307, %v335
        %v355 = vadd.f32 %v308, %v339
        %v356 = vadd.f32 %v309, %v338
        %v357 = vadd.f32 %v310, %v342
        %v358 = vadd.f32 %v311, %v341
        %s359 = sld [smem:[#allocation6]]
        %v360 = vstv %s359
        %v361 = vmul.f32 %v360, %v351
        %v362 = vmul.f32 %v360, %v352
        %v363 = vmul.f32 %v360, %v353
        %v364 = vmul.f32 %v360, %v354
        %v365 = vmul.f32 %v360, %v355
        %v366 = vmul.f32 %v360, %v356
        %v367 = vmul.f32 %v360, %v357
        %v368 = vmul.f32 %v360, %v358
        %s369 = sld [smem:[#allocation6 + $0x1]]
        %v370 = vstv %s369
        %v371 = vmul.f32 %v370, %v351
        %v372 = vmul.f32 %v370, %v352
        %v373 = vmul.f32 %v370, %v353
        %v374 = vmul.f32 %v370, %v354
        %v375 = vmul.f32 %v370, %v355
        %v376 = vmul.f32 %v370, %v356
        %v377 = vmul.f32 %v370, %v357
        %v378 = vmul.f32 %v370, %v358
        %387 = vrot.lane.b32.xlu0 %v371, 127
        %v388 = vpop.permute.xlu0 %387
        %389 = vrot.lane.b32.xlu0 %v372, 127
        %v390 = vpop.permute.xlu0 %389
        %391 = vrot.lane.b32.xlu0 %v373, 127
        %v392 = vpop.permute.xlu0 %391
        %393 = vrot.lane.b32.xlu0 %v374, 127
        %v394 = vpop.permute.xlu0 %393
        %395 = vrot.lane.b32.xlu0 %v375, 127
        %v396 = vpop.permute.xlu0 %395
        %397 = vrot.lane.b32.xlu0 %v376, 127
        %v398 = vpop.permute.xlu0 %397
        %399 = vrot.lane.b32.xlu0 %v377, 127
        %v400 = vpop.permute.xlu0 %399
        %401 = vrot.lane.b32.xlu0 %v378, 127
        %v402 = vpop.permute.xlu0 %401
        %v411 = vadd.f32 %v361, %v388
        %v412 = vadd.f32 %v362, %v390
        %v413 = vadd.f32 %v363, %v392
        %v414 = vadd.f32 %v364, %v394
        %v415 = vadd.f32 %v365, %v396
        %v416 = vadd.f32 %v366, %v398
        %v417 = vadd.f32 %v367, %v400
        %v418 = vadd.f32 %v368, %v402
        %s419 = sld [smem:[#allocation6 + $0x2]]
        %v420 = vstv %s419
        %v421 = vmul.f32 %v420, %v351
        %v422 = vmul.f32 %v420, %v352
        %v423 = vmul.f32 %v420, %v353
        %v424 = vmul.f32 %v420, %v354
        %v425 = vmul.f32 %v420, %v355
        %v426 = vmul.f32 %v420, %v356
        %v427 = vmul.f32 %v420, %v357
        %v428 = vmul.f32 %v420, %v358
        %437 = vrot.lane.b32.xlu0 %v421, 126
        %v438 = vpop.permute.xlu0 %437
        %439 = vrot.lane.b32.xlu0 %v422, 126
        %v440 = vpop.permute.xlu0 %439
        %441 = vrot.lane.b32.xlu0 %v423, 126
        %v442 = vpop.permute.xlu0 %441
        %443 = vrot.lane.b32.xlu0 %v424, 126
        %v444 = vpop.permute.xlu0 %443
        %445 = vrot.lane.b32.xlu0 %v425, 126
        %v446 = vpop.permute.xlu0 %445
        %447 = vrot.lane.b32.xlu0 %v426, 126
        %v448 = vpop.permute.xlu0 %447
        %449 = vrot.lane.b32.xlu0 %v427, 126
        %v450 = vpop.permute.xlu0 %449
        %451 = vrot.lane.b32.xlu0 %v428, 126
        %v452 = vpop.permute.xlu0 %451
        %v461 = vadd.f32 %v411, %v438
        %v462 = vadd.f32 %v412, %v440
        %v463 = vadd.f32 %v413, %v442
        %v464 = vadd.f32 %v414, %v444
        %v465 = vadd.f32 %v415, %v446
        %v466 = vadd.f32 %v416, %v448
        %v467 = vadd.f32 %v417, %v450
        %v468 = vadd.f32 %v418, %v452
        %vm469 = vcmask 113664
        %470 = vst.msk [vmem:[%s245] sm:$0xff] %vm469, %v461
        %vm471 = vcmask 111616
        %472 = vst.msk [vmem:[%s245 + $0x8] sm:$0x3f] %vm471, %v462
        %473 = vst.msk [vmem:[%s245 + $0x10] sm:$0xff] %vm469, %v463
        %474 = vst.msk [vmem:[%s245 + $0x18] sm:$0x3f] %vm471, %v464
        %475 = vst.msk [vmem:[%s245 + $0x20] sm:$0xff] %vm469, %v465
        %476 = vst.msk [vmem:[%s245 + $0x28] sm:$0x3f] %vm471, %v466
        %477 = vst.msk [vmem:[%s245 + $0x30] sm:$0xff] %vm469, %v467
        %478 = vst.msk [vmem:[%s245 + $0x38] sm:$0x3f] %vm471, %v468
        %s479 = smul.u32 4, %s24
        %p480 = scmp.lt.s32.totalorder %s23, 1
        %s481 = scalar_select %p480, %s23, 1
        %p482 = scmp.lt.s32.totalorder %s479, 3
        %s483 = scalar_select %p482, %s479, 3
        %s484 = smul.addr %s483, 2
        %s485 = smul.addr %s481, 8
        %s486 = sadd.s32 %s484, %s485
        %s487 = smul.addr %s486, 8
        %s488 = scalar_lea.vmem %s3, %s487
        // Predicated region
        $region45: #{tpu_custom_call.1} parent=31 // pred_check
          %p489 = pneg %p121
        $region46: #{tpu_custom_call.1} parent=31 // pred_check_branch
          %491 = sbr.rel (%p489) target = $region48
        $region47: #{tpu_custom_call.1} parent=31 // pred_region
          %s492 = smul.u32 4, %s24
        $region48: #{tpu_custom_call.1} parent=31 // pred_fallthru
          _
      $region32: #{tpu_custom_call.1} parent=5 // pred_fallthru
        _
      %p493 = scmp.le.s32.totalorder 2, %s14
      // Predicated region
      $region49: #{tpu_custom_call.1} parent=5 // pred_check
        %p494 = pneg %p493
      $region50: #{tpu_custom_call.1} parent=5 // pred_check_branch
        %496 = sbr.rel (%p494) target = $region52
      $region51: #{tpu_custom_call.1} parent=5 // pred_region
        %s497 = ssub.s32 %s14, 2
        // Predicated region
        $region53: #{tpu_custom_call.1} parent=51 // pred_check
          %p498 = pneg %p127
        $region54: #{tpu_custom_call.1} parent=51 // pred_check_branch
          %500 = sbr.rel (%p498) target = $region56
        $region55: #{tpu_custom_call.1} parent=51 // pred_region
          %s501 = smul.u32 4, %s26
          %p502 = scmp.lt.s32.totalorder %s25, 1
          %s503 = scalar_select %p502, %s25, 1
          %p504 = scmp.lt.s32.totalorder %s501, 3
          %s505 = scalar_select %p504, %s501, 3
          %s506 = smul.addr %s505, 2
          %s507 = smul.addr %s503, 8
          %s508 = sadd.s32 %s506, %s507
          %s509 = smul.addr %s508, 8
          %s510 = scalar_lea.vmem %s3, %s509
        $region56: #{tpu_custom_call.1} parent=51 // pred_fallthru
          _
      $region52: #{tpu_custom_call.1} parent=5 // pred_fallthru
        _
    $region6: #{tpu_custom_call.1} parent=1 // loop_footer
      %s18 = sadd.s32 1, %s14
    $region7: #{tpu_custom_call.1} parent=1 // loop_footer_branch
      %13 = sbr.rel target = $region3
    $region8: #{tpu_custom_call.1} parent=1 // loop_exit
      _
    %511 = vsyncpa [#allocation3], 1
    %s512 = scalar_lea.sflag [#allocation3], 1
    %513 = vsyncpa %s512, 1
    %514 = vsyncpa [#allocation4], 1
    %s515 = scalar_lea.sflag [#allocation4], 1
    %516 = vsyncpa %s515, 1
    %517 = vsyncpa [#allocation5], 1
    %s518 = scalar_lea.sflag [#allocation5], 1
    %519 = vsyncpa %s518, 1

</llo_original>
